<compile_context>
chip_gen: v6e
topology: v6e:2x2x1
jax: 0.10.0
libtpu: 0.0.40
codegen_flags: <defaults>
</compile_context>

<pallas_src>
import functools

import jax
import jax.numpy as jnp
from jax.experimental import pallas as pl
from jax.experimental.pallas import tpu as pltpu

EPS = 1e-5
NEG_SLOPE = 0.2

_VMEM_SOFT_CAP = 48 * 1024 * 1024      # leave >=16 MiB headroom even on 64 MiB v7x
_SMALL_PATH_BUDGET = 28 * 1024 * 1024  # max per-step footprint for the small path


# ---------------------------------------------------------------------------
# Kernels
# ---------------------------------------------------------------------------
def _tconv_block_small_kernel(x_ref, w_ref, g_ref, o_ref, *, inv_count):
    """Small path: Bt whole images per grid step, fully fused.

    x_ref: (Bt, Cin, HW)    w_ref: (4*Cout, Cin)    g_ref: (4*Cout, 4*Cout)
    o_ref: (Bt, 4*Cout, HW)
    """
    w = w_ref[...]
    g = g_ref[...]
    bt = x_ref.shape[0]
    for b in range(bt):  # static unroll; each image is independent
        x = x_ref[b]                                                    # (Cin, HW)
        y = jnp.dot(w, x, preferred_element_type=jnp.float32)           # (c4, HW)

        # mean via W_f @ sum(x): Cin-row lane reduce instead of 4*Cout rows.
        sx = jnp.sum(x.astype(jnp.float32), axis=1, keepdims=True)      # (Cin, 1)
        s = jnp.dot(w.astype(jnp.float32), sx,
                    preferred_element_type=jnp.float32)                 # (c4, 1)
        ss = jnp.sum(y * y, axis=1, keepdims=True)                      # (c4, 1)

        # one tiny group matmul sums the 4 sub-pixel rows of each channel and
        # broadcasts back to every row.
        stats = jnp.concatenate([s, ss], axis=1)                        # (c4, 2)
        gstats = jnp.dot(g, stats, preferred_element_type=jnp.float32)  # (c4, 2)

        mean = gstats[:, 0:1] * inv_count
        var = jnp.maximum(gstats[:, 1:2] * inv_count - mean * mean, 0.0)
        inv = jax.lax.rsqrt(var + EPS)

        z = (y - mean) * inv
        z = jnp.where(z >= 0, z, NEG_SLOPE * z)
        o_ref[b] = z.astype(o_ref.dtype)


def _tconv_stats_kernel(x_ref, w_ref, g_ref, mean_ref, inv_ref,
                        gram_acc, sum_acc, *, inv_count):
    """Tiled path, pass 1: per-image channel stats from x only.

    Accumulate sum(x) and Gram = X X^T over HW tiles; at the last tile
    convert to per-output-channel mean / inv-std:
        sum(y)   = W_f @ sum(x)
        sum(y^2) = rowwise( (W_f @ Gram) * W_f )
    """
    t = pl.program_id(1)

    @pl.when(t == 0)
    def _():
        gram_acc[...] = jnp.zeros_like(gram_acc)
        sum_acc[...] = jnp.zeros_like(sum_acc)

    x = x_ref[0]                                                        # (Cin, tHW)
    gram_acc[...] += jax.lax.dot_general(
        x, x, (((1,), (1,)), ((), ())), preferred_element_type=jnp.float32)
    sum_acc[...] += jnp.sum(x.astype(jnp.float32), axis=1, keepdims=True)

    @pl.when(t == pl.num_programs(1) - 1)
    def _():
        wf = w_ref[...].astype(jnp.float32)                             # (c4, Cin)
        s = jnp.dot(wf, sum_acc[...], preferred_element_type=jnp.float32)   # (c4, 1)
        wg = jnp.dot(wf, gram_acc[...], preferred_element_type=jnp.float32) # (c4, Cin)
        ss = jnp.sum(wg * wf, axis=1, keepdims=True)                    # (c4, 1)

        stats = jnp.concatenate([s, ss], axis=1)                        # (c4, 2)
        gstats = jnp.dot(g_ref[...], stats, preferred_element_type=jnp.float32)

        mean = gstats[:, 0:1] * inv_count
        var = jnp.maximum(gstats[:, 1:2] * inv_count - mean * mean, 0.0)
        mean_ref[0] = mean
        inv_ref[0] = jax.lax.rsqrt(var + EPS)


def _tconv_apply_kernel(x_ref, w_ref, mean_ref, inv_ref, o_ref):
    """Tiled path, pass 2: conv + normalize + LeakyReLU on one HW tile."""
    y = jnp.dot(w_ref[...], x_ref[0], preferred_element_type=jnp.float32)
    z = (y - mean_ref[0]) * inv_ref[0]
    z = jnp.where(z >= 0, z, NEG_SLOPE * z)
    o_ref[0] = z.astype(o_ref.dtype)


# ---------------------------------------------------------------------------
# Wrapper
# ---------------------------------------------------------------------------
def _pick_hw_tile(hw):
    for t in (2048, 1024, 512, 256, 128):
        if hw % t == 0:
            return t
    return None


def _small_path(x, wf, g, n, cin, hw, c4, inv_count, out_dtype,
                in_isz, out_isz, weights_bytes):
    per_image_io = cin * hw * in_isz + c4 * hw * out_isz
    inter_bytes = 3 * c4 * hw * 4
    # largest batch block (<= 8, divides N) that keeps the step footprint small
    bt = 1
    for cand in range(1, min(n, 8) + 1):
        if n % cand == 0 and \
                2 * cand * per_image_io + inter_bytes + weights_bytes <= _SMALL_PATH_BUDGET:
            bt = cand

    vmem_bytes = int(min(_VMEM_SOFT_CAP,
                         max(32 * 1024 * 1024,
                             2 * bt * per_image_io + inter_bytes
                             + 2 * weights_bytes + (4 << 20))))
    cost = pl.CostEstimate(
        flops=2 * n * hw * cin * c4,
        transcendentals=n * c4,
        bytes_accessed=n * cin * hw * in_isz + weights_bytes + n * c4 * hw * out_isz)

    kernel = functools.partial(_tconv_block_small_kernel, inv_count=inv_count)
    return pl.pallas_call(
        kernel,
        out_shape=jax.ShapeDtypeStruct((n, c4, hw), out_dtype),
        grid_spec=pltpu.PrefetchScalarGridSpec(
            num_scalar_prefetch=0,
            grid=(n // bt,),
            in_specs=[
                pl.BlockSpec((bt, cin, hw), lambda b: (b, 0, 0)),
                pl.BlockSpec((c4, cin), lambda b: (0, 0)),
                pl.BlockSpec((c4, c4), lambda b: (0, 0)),
            ],
            out_specs=pl.BlockSpec((bt, c4, hw), lambda b: (b, 0, 0)),
        ),
        compiler_params=pltpu.CompilerParams(
            dimension_semantics=("parallel",),
            vmem_limit_bytes=vmem_bytes),
        cost_estimate=cost,
    )(x, wf, g)


def _tiled_path(x, wf, g, n, cin, hw, c4, hw_tile, inv_count, out_dtype,
                in_isz, out_isz, weights_bytes):
    n_hw = hw // hw_tile

    # ---- pass 1: per-image stats via Gram accumulation in VMEM scratch ----
    stats_vmem = int(min(_VMEM_SOFT_CAP,
                         max(32 * 1024 * 1024,
                             2 * cin * hw_tile * in_isz + cin * cin * 4
                             + 2 * weights_bytes + (4 << 20))))
    stats_kernel = functools.partial(_tconv_stats_kernel, inv_count=inv_count)
    mean, inv = pl.pallas_call(
        stats_kernel,
        out_shape=(jax.ShapeDtypeStruct((n, c4, 1), jnp.float32),
                   jax.ShapeDtypeStruct((n, c4, 1), jnp.float32)),
        grid_spec=pltpu.PrefetchScalarGridSpec(
            num_scalar_prefetch=0,
            grid=(n, n_hw),
            in_specs=[
                pl.BlockSpec((1, cin, hw_tile), lambda b, t: (b, 0, t)),
                pl.BlockSpec((c4, cin), lambda b, t: (0, 0)),
                pl.BlockSpec((c4, c4), lambda b, t: (0, 0)),
            ],
            out_specs=(
                pl.BlockSpec((1, c4, 1), lambda b, t: (b, 0, 0)),
                pl.BlockSpec((1, c4, 1), lambda b, t: (b, 0, 0)),
            ),
            scratch_shapes=[pltpu.VMEM((cin, cin), jnp.float32),
                            pltpu.VMEM((cin, 1), jnp.float32)],
        ),
        compiler_params=pltpu.CompilerParams(
            dimension_semantics=("parallel", "arbitrary"),
            vmem_limit_bytes=stats_vmem),
        cost_estimate=pl.CostEstimate(
            flops=2 * n * hw * cin * cin,
            transcendentals=n * c4,
            bytes_accessed=n * cin * hw * in_isz + weights_bytes),
    )(x, wf, g)

    # ---- pass 2: conv + normalize + LeakyReLU, fully tiled & parallel ----
    per_tile_io = cin * hw_tile * in_isz + c4 * hw_tile * out_isz
    apply_vmem = int(min(_VMEM_SOFT_CAP,
                         max(32 * 1024 * 1024,
                             2 * per_tile_io + 2 * c4 * hw_tile * 4
                             + 2 * weights_bytes + (4 << 20))))
    out_flat = pl.pallas_call(
        _tconv_apply_kernel,
        out_shape=jax.ShapeDtypeStruct((n, c4, hw), out_dtype),
        grid_spec=pltpu.PrefetchScalarGridSpec(
            num_scalar_prefetch=0,
            grid=(n, n_hw),
            in_specs=[
                pl.BlockSpec((1, cin, hw_tile), lambda b, t: (b, 0, t)),
                pl.BlockSpec((c4, cin), lambda b, t: (0, 0)),
                pl.BlockSpec((1, c4, 1), lambda b, t: (b, 0, 0)),
                pl.BlockSpec((1, c4, 1), lambda b, t: (b, 0, 0)),
            ],
            out_specs=pl.BlockSpec((1, c4, hw_tile), lambda b, t: (b, 0, t)),
        ),
        compiler_params=pltpu.CompilerParams(
            dimension_semantics=("parallel", "parallel"),
            vmem_limit_bytes=apply_vmem),
        cost_estimate=pl.CostEstimate(
            flops=2 * n * hw * cin * c4,
            transcendentals=0,
            bytes_accessed=n * cin * hw * in_isz + weights_bytes + n * c4 * hw * out_isz),
    )(x, wf, mean, inv)
    return out_flat


def transpose_conv_block(x_nchw, weight, *, compute_dtype=jnp.float32,
                         out_dtype=None, force_tiled=False, hw_tile=None):
    """x_nchw: (N, Cin, H, W); weight: (Cin, Cout, 2, 2) -> (N, Cout, 2H, 2W).

    compute_dtype=jnp.bfloat16 is recommended on v5e/v6e/v7x (full-rate MXU,
    half the HBM read traffic); accumulation and all norm math stay f32.  The
    output dtype follows compute_dtype unless out_dtype is given; the f32 path
    matches the PyTorch/f32 reference within ~1e-5.
    """
    n, cin, h, w = x_nchw.shape
    cout = weight.shape[1]
    hw = h * w
    c4 = 4 * cout
    in_isz = jnp.dtype(compute_dtype).itemsize
    if out_dtype is None:
        out_dtype = (jnp.bfloat16 if jnp.dtype(compute_dtype) == jnp.dtype(jnp.bfloat16)
                     else jnp.float32)
    out_isz = jnp.dtype(out_dtype).itemsize

    # Glue (no input transpose): NCHW -> (N, Cin, H*W).
    x = x_nchw.reshape(n, cin, hw).astype(compute_dtype)
    # Fused weight: W_f[(kh*2+kw)*Cout + co, ci] = weight[ci, co, kh, kw].
    wf = jnp.transpose(weight, (2, 3, 1, 0)).reshape(c4, cin).astype(compute_dtype)
    # Channel-group matrix for the in-kernel stat reduction.
    rr = jnp.arange(c4, dtype=jnp.int32) % cout
    g = (rr[:, None] == rr[None, :]).astype(jnp.float32)

    inv_count = 1.0 / (4.0 * hw)   # full output spatial extent = (2H)*(2W)
    weights_bytes = c4 * cin * in_isz + c4 * c4 * 4

    if hw_tile is not None:
        assert hw % hw_tile == 0, "hw_tile must divide H*W"
    else:
        hw_tile = _pick_hw_tile(hw)

    per_image_io = cin * hw * in_isz + c4 * hw * out_isz
    small_footprint = 2 * per_image_io + 3 * c4 * hw * 4 + weights_bytes
    use_tiled = force_tiled or (small_footprint > _SMALL_PATH_BUDGET)
    if hw_tile is None:
        # TODO(synk): pad HW to a multiple of 128 so ragged spatial sizes can
        # also take the VMEM-friendly tiled path.
        use_tiled = False

    if use_tiled:
        out_flat = _tiled_path(x, wf, g, n, cin, hw, c4, hw_tile, inv_count,
                               out_dtype, in_isz, out_isz, weights_bytes)
    else:
        out_flat = _small_path(x, wf, g, n, cin, hw, c4, inv_count,
                               out_dtype, in_isz, out_isz, weights_bytes)

    # Re-interleave sub-pixels: (N, 4*Cout, HW), row r = (kh*2+kw)*Cout + co
    #   -> (N, kh, kw, Cout, H, W) -> (N, Cout, H, kh, W, kw) -> (N, Cout, 2H, 2W)
    # TODO(synk): downstream ops could consume the sub-pixel layout directly to
    # avoid this extra HBM read+write of the whole activation.
    out = out_flat.reshape(n, 2, 2, cout, h, w)
    out = jnp.transpose(out, (0, 3, 4, 1, 5, 2)).reshape(n, cout, 2 * h, 2 * w)
    return out


# ---------------------------------------------------------------------------
# Reference & test
# ---------------------------------------------------------------------------
def _reference(x_nchw, weight):
    """Pure-JAX reference matching PyTorch semantics."""
    n, cin, h, w = x_nchw.shape
    cout = weight.shape[1]
    # ConvTranspose2d k=2 s=2: out[n,co,2h+kh,2w+kw] = sum_ci x[n,ci,h,w] W[ci,co,kh,kw]
    y = jnp.einsum('nihw,iokl->nhkwlo', x_nchw, weight)        # (n,h,2,w,2,cout)
    y = y.reshape(n, 2 * h, 2 * w, cout)
    y = jnp.transpose(y, (0, 3, 1, 2))                         # NCHW
    mean = jnp.mean(y, axis=(2, 3), keepdims=True)
    var = jnp.var(y, axis=(2, 3), keepdims=True)               # biased
    z = (y - mean) * jax.lax.rsqrt(var + EPS)
    return jnp.where(z >= 0, z, NEG_SLOPE * z)


if __name__ == "__main__":
    N, CIN, COUT, H, W = 2, 8, 4, 16, 16
    key = jax.random.PRNGKey(0)
    kx, kw = jax.random.split(key)
    x = jax.random.normal(kx, (N, CIN, H, W), dtype=jnp.float32)
    # ConvTranspose2d weight shape: (in_chans, out_chans, kH, kW)
    weight = 0.1 * jax.random.normal(kw, (CIN, COUT, 2, 2), dtype=jnp.float32)

    ref = _reference(x, weight)

    # Small (fully fused, batch-blocked) path.
    out_small = jax.block_until_ready(transpose_conv_block(x, weight))
    assert out_small.shape == (N, COUT, 2 * H, 2 * W), out_small.shape
    assert jnp.allclose(out_small, ref, atol=1e-4, rtol=1e-4), \
        float(jnp.max(jnp.abs(out_small - ref)))

    # HW-tiled two-pass path (what realistic decoder shapes / v7x would use).
    out_tiled = jax.block_until_ready(
        transpose_conv_block(x, weight, force_tiled=True, hw_tile=128))
    assert out_tiled.shape == (N, COUT, 2 * H, 2 * W), out_tiled.shape
    assert jnp.allclose(out_tiled, ref, atol=1e-4, rtol=1e-4), \
        float(jnp.max(jnp.abs(out_tiled - ref)))

    print("KERNEL_OK")
</pallas_src>

<mosaic_0001>
module attributes {stable_mosaic.version = 11 : i64} {
  func.func @_tconv_block_small_kernel(%arg0: i32, %arg1: memref<2x8x256xf32, #tpu.memory_space<vmem>>, %arg2: memref<16x8xf32, #tpu.memory_space<vmem>>, %arg3: memref<16x16xf32, #tpu.memory_space<vmem>>, %arg4: memref<2x16x256xf32, #tpu.memory_space<vmem>>) attributes {dimension_semantics = [#tpu.dimension_semantics<parallel>], iteration_bounds = array<i64: 1>, scalar_prefetch = 0 : i64, scratch_operands = 0 : i64, tpu.core_type = #tpu.core_type<tc>, window_params = [{transform_indices = @transform_0, window_bounds = array<i64: 2, 8, 256>}, {pipeline_mode = #tpu.pipeline_mode<synchronous>, transform_indices = @transform_1, window_bounds = array<i64: 16, 8>}, {pipeline_mode = #tpu.pipeline_mode<synchronous>, transform_indices = @transform_2, window_bounds = array<i64: 16, 16>}, {transform_indices = @transform_3, window_bounds = array<i64: 2, 16, 256>}]} {
    %c0 = arith.constant 0 : index
    %c0_0 = arith.constant 0 : index
    %0 = vector.load %arg2[%c0, %c0_0] : memref<16x8xf32, #tpu.memory_space<vmem>>, vector<16x8xf32>
    %c0_1 = arith.constant 0 : index
    %c0_2 = arith.constant 0 : index
    %1 = vector.load %arg3[%c0_1, %c0_2] : memref<16x16xf32, #tpu.memory_space<vmem>>, vector<16x16xf32>
    %c0_3 = arith.constant 0 : index
    %c0_4 = arith.constant 0 : index
    %c0_5 = arith.constant 0 : index
    %2 = vector.load %arg1[%c0_3, %c0_4, %c0_5] : memref<2x8x256xf32, #tpu.memory_space<vmem>>, vector<1x8x256xf32>
    %3 = vector.shape_cast %2 : vector<1x8x256xf32> to vector<8x256xf32>
    %cst = arith.constant dense<0.000000e+00> : vector<16x256xf32>
    %4 = tpu.matmul %0, %3, %cst {dimension_numbers = #tpu.dot_dimension_numbers<[1], [0], [0], [1], [0, 0, 1, 1], [], []>} : vector<16x8xf32>, vector<8x256xf32>, vector<16x256xf32> -> vector<16x256xf32>
    %cst_6 = arith.constant dense<0.000000e+00> : vector<8xf32>
    %5 = vector.multi_reduction <add>, %3, %cst_6 [1] : vector<8x256xf32> to vector<8xf32>
    %6 = vector.shape_cast %5 : vector<8xf32> to vector<8x1xf32>
    %cst_7 = arith.constant dense<0.000000e+00> : vector<16x1xf32>
    %7 = tpu.matmul %0, %6, %cst_7 {dimension_numbers = #tpu.dot_dimension_numbers<[1], [0], [0], [1], [0, 0, 1, 1], [], []>} : vector<16x8xf32>, vector<8x1xf32>, vector<16x1xf32> -> vector<16x1xf32>
    %8 = arith.mulf %4, %4 : vector<16x256xf32>
    %cst_8 = arith.constant dense<0.000000e+00> : vector<16xf32>
    %9 = vector.multi_reduction <add>, %8, %cst_8 [1] : vector<16x256xf32> to vector<16xf32>
    %10 = vector.shape_cast %9 : vector<16xf32> to vector<16x1xf32>
    %11 = tpu.concatenate %7, %10 in 1 : vector<16x1xf32>, vector<16x1xf32> -> vector<16x2xf32>
    %cst_9 = arith.constant dense<0.000000e+00> : vector<16x2xf32>
    %12 = tpu.matmul %1, %11, %cst_9 {dimension_numbers = #tpu.dot_dimension_numbers<[1], [0], [0], [1], [0, 0, 1, 1], [], []>} : vector<16x16xf32>, vector<16x2xf32>, vector<16x2xf32> -> vector<16x2xf32>
    %13 = vector.extract_strided_slice %12 {offsets = [0, 0], sizes = [16, 1], strides = [1, 1]} : vector<16x2xf32> to vector<16x1xf32>
    %cst_10 = arith.constant 9.765625E-4 : f32
    %14 = vector.broadcast %cst_10 : f32 to vector<16x1xf32>
    %15 = arith.mulf %13, %14 : vector<16x1xf32>
    %16 = vector.extract_strided_slice %12 {offsets = [0, 1], sizes = [16, 1], strides = [1, 1]} : vector<16x2xf32> to vector<16x1xf32>
    %cst_11 = arith.constant 9.765625E-4 : f32
    %17 = vector.broadcast %cst_11 : f32 to vector<16x1xf32>
    %18 = arith.mulf %16, %17 : vector<16x1xf32>
    %19 = arith.mulf %15, %15 : vector<16x1xf32>
    %20 = arith.subf %18, %19 : vector<16x1xf32>
    %cst_12 = arith.constant 0.000000e+00 : f32
    %21 = vector.broadcast %cst_12 : f32 to vector<16x1xf32>
    %22 = arith.maximumf %20, %21 : vector<16x1xf32>
    %cst_13 = arith.constant 9.99999974E-6 : f32
    %23 = vector.broadcast %cst_13 : f32 to vector<16x1xf32>
    %24 = arith.addf %22, %23 : vector<16x1xf32>
    %25 = math.rsqrt %24 : vector<16x1xf32>
    %26 = vector.broadcast %15 : vector<16x1xf32> to vector<16x256xf32>
    %27 = arith.subf %4, %26 : vector<16x256xf32>
    %28 = vector.broadcast %25 : vector<16x1xf32> to vector<16x256xf32>
    %29 = arith.mulf %27, %28 : vector<16x256xf32>
    %cst_14 = arith.constant 0.000000e+00 : f32
    %30 = vector.broadcast %cst_14 : f32 to vector<16x256xf32>
    %31 = arith.cmpf oge, %29, %30 : vector<16x256xf32>
    %cst_15 = arith.constant 2.000000e-01 : f32
    %32 = vector.broadcast %cst_15 : f32 to vector<16x256xf32>
    %33 = arith.mulf %32, %29 : vector<16x256xf32>
    %34 = arith.select %31, %29, %33 : vector<16x256xi1>, vector<16x256xf32>
    %c0_16 = arith.constant 0 : index
    %c0_17 = arith.constant 0 : index
    %c0_18 = arith.constant 0 : index
    %35 = vector.load %arg4[%c0_16, %c0_17, %c0_18] : memref<2x16x256xf32, #tpu.memory_space<vmem>>, vector<1x16x256xf32>
    %36 = vector.shape_cast %35 : vector<1x16x256xf32> to vector<16x256xf32>
    %37 = vector.shape_cast %34 : vector<16x256xf32> to vector<1x16x256xf32>
    tpu.vector_store %arg4[%c0_16, %c0_17, %c0_18], %37 {strides = array<i32>} : memref<2x16x256xf32, #tpu.memory_space<vmem>>, vector<1x16x256xf32>,
    %c1 = arith.constant 1 : index
    %c0_19 = arith.constant 0 : index
    %c0_20 = arith.constant 0 : index
    %38 = vector.load %arg1[%c1, %c0_19, %c0_20] : memref<2x8x256xf32, #tpu.memory_space<vmem>>, vector<1x8x256xf32>
    %39 = vector.shape_cast %38 : vector<1x8x256xf32> to vector<8x256xf32>
    %cst_21 = arith.constant dense<0.000000e+00> : vector<16x256xf32>
    %40 = tpu.matmul %0, %39, %cst_21 {dimension_numbers = #tpu.dot_dimension_numbers<[1], [0], [0], [1], [0, 0, 1, 1], [], []>} : vector<16x8xf32>, vector<8x256xf32>, vector<16x256xf32> -> vector<16x256xf32>
    %cst_22 = arith.constant dense<0.000000e+00> : vector<8xf32>
    %41 = vector.multi_reduction <add>, %39, %cst_22 [1] : vector<8x256xf32> to vector<8xf32>
    %42 = vector.shape_cast %41 : vector<8xf32> to vector<8x1xf32>
    %cst_23 = arith.constant dense<0.000000e+00> : vector<16x1xf32>
    %43 = tpu.matmul %0, %42, %cst_23 {dimension_numbers = #tpu.dot_dimension_numbers<[1], [0], [0], [1], [0, 0, 1, 1], [], []>} : vector<16x8xf32>, vector<8x1xf32>, vector<16x1xf32> -> vector<16x1xf32>
    %44 = arith.mulf %40, %40 : vector<16x256xf32>
    %cst_24 = arith.constant dense<0.000000e+00> : vector<16xf32>
    %45 = vector.multi_reduction <add>, %44, %cst_24 [1] : vector<16x256xf32> to vector<16xf32>
    %46 = vector.shape_cast %45 : vector<16xf32> to vector<16x1xf32>
    %47 = tpu.concatenate %43, %46 in 1 : vector<16x1xf32>, vector<16x1xf32> -> vector<16x2xf32>
    %cst_25 = arith.constant dense<0.000000e+00> : vector<16x2xf32>
    %48 = tpu.matmul %1, %47, %cst_25 {dimension_numbers = #tpu.dot_dimension_numbers<[1], [0], [0], [1], [0, 0, 1, 1], [], []>} : vector<16x16xf32>, vector<16x2xf32>, vector<16x2xf32> -> vector<16x2xf32>
    %49 = vector.extract_strided_slice %48 {offsets = [0, 0], sizes = [16, 1], strides = [1, 1]} : vector<16x2xf32> to vector<16x1xf32>
    %cst_26 = arith.constant 9.765625E-4 : f32
    %50 = vector.broadcast %cst_26 : f32 to vector<16x1xf32>
    %51 = arith.mulf %49, %50 : vector<16x1xf32>
    %52 = vector.extract_strided_slice %48 {offsets = [0, 1], sizes = [16, 1], strides = [1, 1]} : vector<16x2xf32> to vector<16x1xf32>
    %cst_27 = arith.constant 9.765625E-4 : f32
    %53 = vector.broadcast %cst_27 : f32 to vector<16x1xf32>
    %54 = arith.mulf %52, %53 : vector<16x1xf32>
    %55 = arith.mulf %51, %51 : vector<16x1xf32>
    %56 = arith.subf %54, %55 : vector<16x1xf32>
    %cst_28 = arith.constant 0.000000e+00 : f32
    %57 = vector.broadcast %cst_28 : f32 to vector<16x1xf32>
    %58 = arith.maximumf %56, %57 : vector<16x1xf32>
    %cst_29 = arith.constant 9.99999974E-6 : f32
    %59 = vector.broadcast %cst_29 : f32 to vector<16x1xf32>
    %60 = arith.addf %58, %59 : vector<16x1xf32>
    %61 = math.rsqrt %60 : vector<16x1xf32>
    %62 = vector.broadcast %51 : vector<16x1xf32> to vector<16x256xf32>
    %63 = arith.subf %40, %62 : vector<16x256xf32>
    %64 = vector.broadcast %61 : vector<16x1xf32> to vector<16x256xf32>
    %65 = arith.mulf %63, %64 : vector<16x256xf32>
    %cst_30 = arith.constant 0.000000e+00 : f32
    %66 = vector.broadcast %cst_30 : f32 to vector<16x256xf32>
    %67 = arith.cmpf oge, %65, %66 : vector<16x256xf32>
    %cst_31 = arith.constant 2.000000e-01 : f32
    %68 = vector.broadcast %cst_31 : f32 to vector<16x256xf32>
    %69 = arith.mulf %68, %65 : vector<16x256xf32>
    %70 = arith.select %67, %65, %69 : vector<16x256xi1>, vector<16x256xf32>
    %c1_32 = arith.constant 1 : index
    %c0_33 = arith.constant 0 : index
    %c0_34 = arith.constant 0 : index
    %71 = vector.load %arg4[%c1_32, %c0_33, %c0_34] : memref<2x16x256xf32, #tpu.memory_space<vmem>>, vector<1x16x256xf32>
    %72 = vector.shape_cast %71 : vector<1x16x256xf32> to vector<16x256xf32>
    %73 = vector.shape_cast %70 : vector<16x256xf32> to vector<1x16x256xf32>
    tpu.vector_store %arg4[%c1_32, %c0_33, %c0_34], %73 {strides = array<i32>} : memref<2x16x256xf32, #tpu.memory_space<vmem>>, vector<1x16x256xf32>,
    return
  }
  func.func @transform_0(%arg0: i32) -> (i32, i32, i32) {
    %c0_i32 = arith.constant 0 : i32
    %c0_i32_0 = arith.constant 0 : i32
    %c0_i32_1 = arith.constant 0 : i32
    return %arg0, %c0_i32, %c0_i32_0 : i32, i32, i32
  }
  func.func @transform_1(%arg0: i32) -> (i32, i32) {
    %c0_i32 = arith.constant 0 : i32
    %c0_i32_0 = arith.constant 0 : i32
    %c0_i32_1 = arith.constant 0 : i32
    return %c0_i32, %c0_i32_0 : i32, i32
  }
  func.func @transform_2(%arg0: i32) -> (i32, i32) {
    %c0_i32 = arith.constant 0 : i32
    %c0_i32_0 = arith.constant 0 : i32
    %c0_i32_1 = arith.constant 0 : i32
    return %c0_i32, %c0_i32_0 : i32, i32
  }
  func.func @transform_3(%arg0: i32) -> (i32, i32, i32) {
    %c0_i32 = arith.constant 0 : i32
    %c0_i32_0 = arith.constant 0 : i32
    %c0_i32_1 = arith.constant 0 : i32
    return %arg0, %c0_i32, %c0_i32_0 : i32, i32, i32
  }
}

</mosaic_0001>

<llo_original>
// kernel: tpu_custom_call.1
$region0: #{tpu_custom_call.1}
  #allocation0 [shape = 'u32[]', space=smem, size = 0x4, offset = 0x4, fixed_abs, tag = 'smem constant byte address 0x4 - core index']
  #allocation1 [shape = 'u32[144,128]{1,0:T(1,128)}', space=vmem, size = 0x12000, scoped, tag = 'internal scratch']
  %s0 = inlined_call_operand.hbm [shape: f32[2,8,256], index: 0, kind: input, shape index: {}]
  %s1 = inlined_call_operand.vmem [shape: f32[16,8], index: 1, kind: input, shape index: {}]
  %s2 = inlined_call_operand.vmem [shape: f32[16,16], index: 2, kind: input, shape index: {}]
  %s3 = inlined_call_operand.hbm [shape: f32[2,16,256], index: 3, kind: output, shape index: {}]
  %s4 = sld [smem:[#allocation0]]
  $region26: #{tpu_custom_call.1} parent=0
    _
  %s6 = ssub.s32 1, %s4
  %s7 = scalar_select 0, %s6, %s4
  $region1: #{tpu_custom_call.1} parent=0
    #allocation2 [shape = 'u8[16384]{0}', space=vmem, size = 0x4000, scoped, tag = 'input window, operand 0, single buffered']
    #allocation3 [shape = 's32[1]{0}', space=sflag, size = 0x4, scoped, tag = 'scoped memory for tpu_custom_call.1']
    #allocation4 [shape = 's32[1]{0}', space=sflag, size = 0x4, scoped, tag = 'scoped memory for tpu_custom_call.1']
    #allocation5 [shape = 'u8[32768]{0}', space=vmem, size = 0x8000, scoped, tag = 'output window, operand 0, single buffered']
    %8 = vsyncpa [#allocation3], 0
    %9 = vsyncpa [#allocation4], 0
    // Predicated region
    $region2: #{tpu_custom_call.1} parent=1 // pred_check
      _
    $region3: #{tpu_custom_call.1} parent=1 // pred_check_branch
      %11 = sbr.rel (0) target = $region5
    $region4: #{tpu_custom_call.1} parent=1 // pred_region
      %s13 = ssub.s32 512, 512
      %14 = vsyncadd [#allocation3], %s13
      %s15 = sshll.u32 [#allocation2], 4
      %s16 = int_to_ptr.vmem [resolvable:$true] %s15
      %21 = dma.hbm_to_vmem [thread:$0]  %s0, 512, %s16, [#allocation3], 256, 256, 16
    $region5: #{tpu_custom_call.1} parent=1 // pred_fallthru
      _
    // Predicated region
    $region6: #{tpu_custom_call.1} parent=1 // pred_check
      _
    $region7: #{tpu_custom_call.1} parent=1 // pred_check_branch
      %23 = sbr.rel (0) target = $region9
    $region8: #{tpu_custom_call.1} parent=1 // pred_region
      _
    $region9: #{tpu_custom_call.1} parent=1 // pred_fallthru
      _
    // Predicated region
    $region10: #{tpu_custom_call.1} parent=1 // pred_check
      _
    $region11: #{tpu_custom_call.1} parent=1 // pred_check_branch
      %25 = sbr.rel (0) target = $region13
    $region12: #{tpu_custom_call.1} parent=1 // pred_region
      _
    $region13: #{tpu_custom_call.1} parent=1 // pred_fallthru
      _
    // Predicated region
    $region14: #{tpu_custom_call.1} parent=1 // pred_check
      _
    $region15: #{tpu_custom_call.1} parent=1 // pred_check_branch
      %27 = sbr.rel (0) target = $region17
    $region16: #{tpu_custom_call.1} parent=1 // pred_region
      %28 = dma.done [#allocation3], 512
    $region17: #{tpu_custom_call.1} parent=1 // pred_fallthru
      _
    %v29 = vld [vmem:[%s1] sm:$0xff]
    %v30 = vld [vmem:[%s1 + $0x8] sm:$0xff]
    %v31 = vld [vmem:[%s2] sm:$0xff]
    %v32 = vld [vmem:[%s2 + $0x8] sm:$0xff]
    %v33 = vld [vmem:[#allocation2] sm:$0xff]
    %v34 = vld [vmem:[#allocation2 + $0x8] sm:$0xff]
    %vm35 = vcmask 64512
    %v37 = vsel %vm35, %v29, 0
    %v40 = vsel %vm35, %v30, 0
    %42 = vmatprep.subr.mxu0 0.0
    %43 = vmatpush1.msra.mxu0 0.0
    %44 = vmatprep.subr.mxu0 0.0
    %45 = vmatpush1.msra.mxu0 0.0
    %46 = vmatprep.subr.mxu0 0.0
    %47 = vmatpush1.msra.mxu0 0.0
    %48 = vmatprep.subr.mxu0 0.0
    %49 = vmatpush1.msra.mxu0 0.0
    %50 = vmatprep.subr.mxu0 0.0
    %51 = vmatpush1.msra.mxu0 0.0
    %52 = vmatprep.subr.mxu0 0.0
    %53 = vmatpush1.msra.mxu0 0.0
    %54 = vmatprep.subr.mxu0 0.0
    %55 = vmatpush1.msra.mxu0 0.0
    %56 = vmatprep.subr.mxu0 0.0
    %57 = vmatpush1.msra.mxu0 0.0
    %58 = vmatprep.subr.mxu0 0.0
    %59 = vmatpush1.msra.mxu0 0.0
    %60 = vmatprep.subr.mxu0 0.0
    %61 = vmatpush1.msra.mxu0 0.0
    %62 = vmatprep.subr.mxu0 0.0
    %63 = vmatpush1.msra.mxu0 0.0
    %64 = vmatprep.subr.mxu0 0.0
    %65 = vmatpush1.msra.mxu0 0.0
    %66 = vmatprep.subr.mxu0 0.0
    %67 = vmatpush1.msra.mxu0 0.0
    %68 = vmatprep.subr.mxu0 0.0
    %69 = vmatpush1.msra.mxu0 0.0
    %70 = vmatprep.subr.mxu0 0.0
    %71 = vmatpush1.msra.mxu0 0.0
    %72 = vmatprep.subr.mxu0 %v34
    %73 = vmatpush1.msra.mxu0 %v33
    %74 = vmatprep.subr.mxu0 0.0
    %75 = vmatpush2.msra.mxu0 0.0
    %76 = vmatprep.subr.mxu0 0.0
    %77 = vmatpush2.msra.mxu0 0.0
    %78 = vmatprep.subr.mxu0 0.0
    %79 = vmatpush2.msra.mxu0 0.0
    %80 = vmatprep.subr.mxu0 0.0
    %81 = vmatpush2.msra.mxu0 0.0
    %82 = vmatprep.subr.mxu0 0.0
    %83 = vmatpush2.msra.mxu0 0.0
    %84 = vmatprep.subr.mxu0 0.0
    %85 = vmatpush2.msra.mxu0 0.0
    %86 = vmatprep.subr.mxu0 0.0
    %87 = vmatpush2.msra.mxu0 0.0
    %88 = vmatprep.subr.mxu0 0.0
    %89 = vmatpush2.msra.mxu0 0.0
    %90 = vmatprep.subr.mxu0 0.0
    %91 = vmatpush2.msra.mxu0 0.0
    %92 = vmatprep.subr.mxu0 0.0
    %93 = vmatpush2.msra.mxu0 0.0
    %94 = vmatprep.subr.mxu0 0.0
    %95 = vmatpush2.msra.mxu0 0.0
    %96 = vmatprep.subr.mxu0 0.0
    %97 = vmatpush2.msra.mxu0 0.0
    %98 = vmatprep.subr.mxu0 0.0
    %99 = vmatpush2.msra.mxu0 0.0
    %100 = vmatprep.subr.mxu0 0.0
    %101 = vmatpush2.msra.mxu0 0.0
    %102 = vmatprep.subr.mxu0 0.0
    %103 = vmatpush2.msra.mxu0 0.0
    %104 = vmatprep.subr.mxu0 0.0
    %105 = vmatpush2.msra.mxu0 0.0
    %106 = vmatprep.mubr.f32.mxu0 0.0
    %107 = vmatmul.mubr.f32.gmra.mxu0 %v37
    %v108 = vpop.f32.mrf.mxu0
    %v109 = vadd.f32 0.0, %v108
    %v110 = vpop.f32.mrf.mxu0
    %v111 = vadd.f32 0.0, %v110
    %112 = vmatprep.mubr.f32.mxu0 0.0
    %113 = vmatmul.mubr.f32.gmra.mxu0 %v40
    %v114 = vpop.f32.mrf.mxu0
    %v115 = vadd.f32 0.0, %v114
    %v116 = vpop.f32.mrf.mxu0
    %v117 = vadd.f32 0.0, %v116
    %118 = vdwg.mxu0
    %v119 = vadd.f32 %v33, %v34
    %120 = vadd.xlane.f32.xlu0 %v119
    %v121 = vpop.xlane.xlu0 %120
    %122 = vmatprep.subr.mxu0 0.0
    %123 = vmatpush1.msra.mxu0 0.0
    %124 = vmatprep.subr.mxu0 0.0
    %125 = vmatpush1.msra.mxu0 0.0
    %126 = vmatprep.subr.mxu0 0.0
    %127 = vmatpush1.msra.mxu0 0.0
    %128 = vmatprep.subr.mxu0 0.0
    %129 = vmatpush1.msra.mxu0 0.0
    %130 = vmatprep.subr.mxu0 0.0
    %131 = vmatpush1.msra.mxu0 0.0
    %132 = vmatprep.subr.mxu0 0.0
    %133 = vmatpush1.msra.mxu0 0.0
    %134 = vmatprep.subr.mxu0 0.0
    %135 = vmatpush1.msra.mxu0 0.0
    %136 = vmatprep.subr.mxu0 0.0
    %137 = vmatpush1.msra.mxu0 0.0
    %138 = vmatprep.subr.mxu0 0.0
    %139 = vmatpush1.msra.mxu0 0.0
    %140 = vmatprep.subr.mxu0 0.0
    %141 = vmatpush1.msra.mxu0 0.0
    %142 = vmatprep.subr.mxu0 0.0
    %143 = vmatpush1.msra.mxu0 0.0
    %144 = vmatprep.subr.mxu0 0.0
    %145 = vmatpush1.msra.mxu0 0.0
    %146 = vmatprep.subr.mxu0 0.0
    %147 = vmatpush1.msra.mxu0 0.0
    %148 = vmatprep.subr.mxu0 0.0
    %149 = vmatpush1.msra.mxu0 0.0
    %150 = vmatprep.subr.mxu0 0.0
    %151 = vmatpush1.msra.mxu0 0.0
    %152 = vmatprep.subr.mxu0 0.0
    %153 = vmatpush1.msra.mxu0 %v121
    %154 = vmatprep.subr.mxu0 0.0
    %155 = vmatpush2.msra.mxu0 0.0
    %156 = vmatprep.subr.mxu0 0.0
    %157 = vmatpush2.msra.mxu0 0.0
    %158 = vmatprep.subr.mxu0 0.0
    %159 = vmatpush2.msra.mxu0 0.0
    %160 = vmatprep.subr.mxu0 0.0
    %161 = vmatpush2.msra.mxu0 0.0
    %162 = vmatprep.subr.mxu0 0.0
    %163 = vmatpush2.msra.mxu0 0.0
    %164 = vmatprep.subr.mxu0 0.0
    %165 = vmatpush2.msra.mxu0 0.0
    %166 = vmatprep.subr.mxu0 0.0
    %167 = vmatpush2.msra.mxu0 0.0
    %168 = vmatprep.subr.mxu0 0.0
    %169 = vmatpush2.msra.mxu0 0.0
    %170 = vmatprep.subr.mxu0 0.0
    %171 = vmatpush2.msra.mxu0 0.0
    %172 = vmatprep.subr.mxu0 0.0
    %173 = vmatpush2.msra.mxu0 0.0
    %174 = vmatprep.subr.mxu0 0.0
    %175 = vmatpush2.msra.mxu0 0.0
    %176 = vmatprep.subr.mxu0 0.0
    %177 = vmatpush2.msra.mxu0 0.0
    %178 = vmatprep.subr.mxu0 0.0
    %179 = vmatpush2.msra.mxu0 0.0
    %180 = vmatprep.subr.mxu0 0.0
    %181 = vmatpush2.msra.mxu0 0.0
    %182 = vmatprep.subr.mxu0 0.0
    %183 = vmatpush2.msra.mxu0 0.0
    %184 = vmatprep.subr.mxu0 0.0
    %185 = vmatpush2.msra.mxu0 0.0
    %186 = vmatprep.mubr.f32.mxu0 0.0
    %187 = vmatmul.mubr.f32.gmra.mxu0 %v37
    %v188 = vpop.f32.mrf.mxu0
    %v189 = vadd.f32 0.0, %v188
    %v190 = vpop.f32.mrf.mxu0
    %191 = vmatprep.mubr.f32.mxu0 0.0
    %192 = vmatmul.mubr.f32.gmra.mxu0 %v40
    %v193 = vpop.f32.mrf.mxu0
    %v194 = vadd.f32 0.0, %v193
    %v195 = vpop.f32.mrf.mxu0
    %196 = vdwg.mxu0
    %v197 = vmul.f32 %v109, %v109
    %v198 = vmul.f32 %v111, %v111
    %v199 = vmul.f32 %v115, %v115
    %v200 = vmul.f32 %v117, %v117
    %v201 = vadd.f32 %v197, %v198
    %202 = vadd.xlane.f32.xlu0 %v201
    %v203 = vpop.xlane.xlu0 %202
    %v204 = vadd.f32 %v199, %v200
    %205 = vadd.xlane.f32.xlu0 %v204
    %v206 = vpop.xlane.xlu0 %205
    %vm207 = vcmask 7168
    %v208 = vsel %vm207, %v189, %v203
    %v209 = vsel %vm207, %v194, %v206
    %vm210 = vcmask 130048
    %v212 = vsel %vm210, %v31, 0
    %v215 = vsel %vm210, %v32, 0
    %217 = vmatprep.subr.mxu0 0.0
    %218 = vmatpush1.msra.mxu0 0.0
    %219 = vmatprep.subr.mxu0 0.0
    %220 = vmatpush1.msra.mxu0 0.0
    %221 = vmatprep.subr.mxu0 0.0
    %222 = vmatpush1.msra.mxu0 0.0
    %223 = vmatprep.subr.mxu0 0.0
    %224 = vmatpush1.msra.mxu0 0.0
    %225 = vmatprep.subr.mxu0 0.0
    %226 = vmatpush1.msra.mxu0 0.0
    %227 = vmatprep.subr.mxu0 0.0
    %228 = vmatpush1.msra.mxu0 0.0
    %229 = vmatprep.subr.mxu0 0.0
    %230 = vmatpush1.msra.mxu0 0.0
    %231 = vmatprep.subr.mxu0 0.0
    %232 = vmatpush1.msra.mxu0 0.0
    %233 = vmatprep.subr.mxu0 0.0
    %234 = vmatpush1.msra.mxu0 0.0
    %235 = vmatprep.subr.mxu0 0.0
    %236 = vmatpush1.msra.mxu0 0.0
    %237 = vmatprep.subr.mxu0 0.0
    %238 = vmatpush1.msra.mxu0 0.0
    %239 = vmatprep.subr.mxu0 0.0
    %240 = vmatpush1.msra.mxu0 0.0
    %241 = vmatprep.subr.mxu0 0.0
    %242 = vmatpush1.msra.mxu0 0.0
    %243 = vmatprep.subr.mxu0 0.0
    %244 = vmatpush1.msra.mxu0 0.0
    %245 = vmatprep.subr.mxu0 0.0
    %246 = vmatpush1.msra.mxu0 %v209
    %247 = vmatprep.subr.mxu0 0.0
    %248 = vmatpush1.msra.mxu0 %v208
    %249 = vmatprep.subr.mxu0 0.0
    %250 = vmatpush2.msra.mxu0 0.0
    %251 = vmatprep.subr.mxu0 0.0
    %252 = vmatpush2.msra.mxu0 0.0
    %253 = vmatprep.subr.mxu0 0.0
    %254 = vmatpush2.msra.mxu0 0.0
    %255 = vmatprep.subr.mxu0 0.0
    %256 = vmatpush2.msra.mxu0 0.0
    %257 = vmatprep.subr.mxu0 0.0
    %258 = vmatpush2.msra.mxu0 0.0
    %259 = vmatprep.subr.mxu0 0.0
    %260 = vmatpush2.msra.mxu0 0.0
    %261 = vmatprep.subr.mxu0 0.0
    %262 = vmatpush2.msra.mxu0 0.0
    %263 = vmatprep.subr.mxu0 0.0
    %264 = vmatpush2.msra.mxu0 0.0
    %265 = vmatprep.subr.mxu0 0.0
    %266 = vmatpush2.msra.mxu0 0.0
    %267 = vmatprep.subr.mxu0 0.0
    %268 = vmatpush2.msra.mxu0 0.0
    %269 = vmatprep.subr.mxu0 0.0
    %270 = vmatpush2.msra.mxu0 0.0
    %271 = vmatprep.subr.mxu0 0.0
    %272 = vmatpush2.msra.mxu0 0.0
    %273 = vmatprep.subr.mxu0 0.0
    %274 = vmatpush2.msra.mxu0 0.0
    %275 = vmatprep.subr.mxu0 0.0
    %276 = vmatpush2.msra.mxu0 0.0
    %277 = vmatprep.subr.mxu0 0.0
    %278 = vmatpush2.msra.mxu0 0.0
    %279 = vmatprep.subr.mxu0 0.0
    %280 = vmatpush2.msra.mxu0 0.0
    %281 = vmatprep.mubr.f32.mxu0 0.0
    %282 = vmatmul.mubr.f32.gmra.mxu0 %v212
    %v283 = vpop.f32.mrf.mxu0
    %v284 = vadd.f32 0.0, %v283
    %v285 = vpop.f32.mrf.mxu0
    %286 = vmatprep.mubr.f32.mxu0 0.0
    %287 = vmatmul.mubr.f32.gmra.mxu0 %v215
    %v288 = vpop.f32.mrf.mxu0
    %v289 = vadd.f32 0.0, %v288
    %v290 = vpop.f32.mrf.mxu0
    %291 = vdwg.mxu0
    %v292 = vmul.f32 %v284, 0.0009765625
    %v293 = vmul.f32 %v289, 0.0009765625
    %v294 = vmul.f32 %v292, %v292
    %v295 = vmul.f32 %v293, %v293
    %298 = vrot.lane.b32.xlu0 %v294, 1
    %v299 = vpop.permute.xlu0 %298
    %300 = vrot.lane.b32.xlu0 %v295, 1
    %v301 = vpop.permute.xlu0 %300
    %v304 = vsub.f32 %v292, %v299
    %v305 = vsub.f32 %v293, %v301
    %v306 = vmax.f32 %v304, 0.0
    %v307 = vmax.f32 %v305, 0.0
    %v308 = vadd.f32 %v306, 1e-05
    %v309 = vadd.f32 %v307, 1e-05
    %v310 = vrsqrt.pop %v308
    %v311 = vrsqrt.pop %v309
    %313 = vset.pattern.permute.xlu0 0
    %314 = vperm.xlu0 %313, %v292
    %v315 = vpop.permute.xlu0 %314
    %318 = vset.pattern.permute.xlu0 0
    %319 = vperm.xlu0 %318, %v293
    %v320 = vpop.permute.xlu0 %319
    %v322 = vsub.f32 %v109, %v315
    %v323 = vsub.f32 %v111, %v315
    %v324 = vsub.f32 %v115, %v320
    %v325 = vsub.f32 %v117, %v320
    %327 = vset.pattern.permute.xlu0 1
    %328 = vperm.xlu0 %327, %v310
    %v329 = vpop.permute.xlu0 %328
    %332 = vset.pattern.permute.xlu0 1
    %333 = vperm.xlu0 %332, %v311
    %v334 = vpop.permute.xlu0 %333
    %v336 = vmul.f32 %v322, %v329
    %v337 = vmul.f32 %v323, %v329
    %v338 = vmul.f32 %v324, %v334
    %v339 = vmul.f32 %v325, %v334
    %vm340 = vcmp.ge.f32.partialorder %v336, 0.0
    %vm341 = vcmp.ge.f32.partialorder %v337, 0.0
    %vm342 = vcmp.ge.f32.partialorder %v338, 0.0
    %vm343 = vcmp.ge.f32.partialorder %v339, 0.0
    %v344 = vmul.f32 %v336, 0.2
    %v345 = vmul.f32 %v337, 0.2
    %v346 = vmul.f32 %v338, 0.2
    %v347 = vmul.f32 %v339, 0.2
    %v348 = vsel %vm340, %v336, %v344
    %v349 = vsel %vm341, %v337, %v345
    %v350 = vsel %vm342, %v338, %v346
    %v351 = vsel %vm343, %v339, %v347
    %352 = vst [vmem:[#allocation5] sm:$0xff] %v348
    %353 = vst [vmem:[#allocation5 + $0x8] sm:$0xff] %v349
    %354 = vst [vmem:[#allocation5 + $0x10] sm:$0xff] %v350
    %355 = vst [vmem:[#allocation5 + $0x18] sm:$0xff] %v351
    %s356 = scalar_lea.vmem [#allocation2], 16
    %v357 = vld [vmem:[%s356] sm:$0xff]
    %v358 = vld [vmem:[%s356 + $0x8] sm:$0xff]
    %359 = vmatprep.subr.mxu0 0.0
    %360 = vmatpush1.msra.mxu0 0.0
    %361 = vmatprep.subr.mxu0 0.0
    %362 = vmatpush1.msra.mxu0 0.0
    %363 = vmatprep.subr.mxu0 0.0
    %364 = vmatpush1.msra.mxu0 0.0
    %365 = vmatprep.subr.mxu0 0.0
    %366 = vmatpush1.msra.mxu0 0.0
    %367 = vmatprep.subr.mxu0 0.0
    %368 = vmatpush1.msra.mxu0 0.0
    %369 = vmatprep.subr.mxu0 0.0
    %370 = vmatpush1.msra.mxu0 0.0
    %371 = vmatprep.subr.mxu0 0.0
    %372 = vmatpush1.msra.mxu0 0.0
    %373 = vmatprep.subr.mxu0 0.0
    %374 = vmatpush1.msra.mxu0 0.0
    %375 = vmatprep.subr.mxu0 0.0
    %376 = vmatpush1.msra.mxu0 0.0
    %377 = vmatprep.subr.mxu0 0.0
    %378 = vmatpush1.msra.mxu0 0.0
    %379 = vmatprep.subr.mxu0 0.0
    %380 = vmatpush1.msra.mxu0 0.0
    %381 = vmatprep.subr.mxu0 0.0
    %382 = vmatpush1.msra.mxu0 0.0
    %383 = vmatprep.subr.mxu0 0.0
    %384 = vmatpush1.msra.mxu0 0.0
    %385 = vmatprep.subr.mxu0 0.0
    %386 = vmatpush1.msra.mxu0 0.0
    %387 = vmatprep.subr.mxu0 0.0
    %388 = vmatpush1.msra.mxu0 0.0
    %389 = vmatprep.subr.mxu0 %v358
    %390 = vmatpush1.msra.mxu0 %v357
    %391 = vmatprep.subr.mxu0 0.0
    %392 = vmatpush2.msra.mxu0 0.0
    %393 = vmatprep.subr.mxu0 0.0
    %394 = vmatpush2.msra.mxu0 0.0
    %395 = vmatprep.subr.mxu0 0.0
    %396 = vmatpush2.msra.mxu0 0.0
    %397 = vmatprep.subr.mxu0 0.0
    %398 = vmatpush2.msra.mxu0 0.0
    %399 = vmatprep.subr.mxu0 0.0
    %400 = vmatpush2.msra.mxu0 0.0
    %401 = vmatprep.subr.mxu0 0.0
    %402 = vmatpush2.msra.mxu0 0.0
    %403 = vmatprep.subr.mxu0 0.0
    %404 = vmatpush2.msra.mxu0 0.0
    %405 = vmatprep.subr.mxu0 0.0
    %406 = vmatpush2.msra.mxu0 0.0
    %407 = vmatprep.subr.mxu0 0.0
    %408 = vmatpush2.msra.mxu0 0.0
    %409 = vmatprep.subr.mxu0 0.0
    %410 = vmatpush2.msra.mxu0 0.0
    %411 = vmatprep.subr.mxu0 0.0
    %412 = vmatpush2.msra.mxu0 0.0
    %413 = vmatprep.subr.mxu0 0.0
    %414 = vmatpush2.msra.mxu0 0.0
    %415 = vmatprep.subr.mxu0 0.0
    %416 = vmatpush2.msra.mxu0 0.0
    %417 = vmatprep.subr.mxu0 0.0
    %418 = vmatpush2.msra.mxu0 0.0
    %419 = vmatprep.subr.mxu0 0.0
    %420 = vmatpush2.msra.mxu0 0.0
    %421 = vmatprep.subr.mxu0 0.0
    %422 = vmatpush2.msra.mxu0 0.0
    %423 = vmatprep.mubr.f32.mxu0 0.0
    %424 = vmatmul.mubr.f32.gmra.mxu0 %v37
    %v425 = vpop.f32.mrf.mxu0
    %v426 = vadd.f32 0.0, %v425
    %v427 = vpop.f32.mrf.mxu0
    %v428 = vadd.f32 0.0, %v427
    %429 = vmatprep.mubr.f32.mxu0 0.0
    %430 = vmatmul.mubr.f32.gmra.mxu0 %v40
    %v431 = vpop.f32.mrf.mxu0
    %v432 = vadd.f32 0.0, %v431
    %v433 = vpop.f32.mrf.mxu0
    %v434 = vadd.f32 0.0, %v433
    %435 = vdwg.mxu0
    %v436 = vadd.f32 %v357, %v358
    %437 = vadd.xlane.f32.xlu0 %v436
    %v438 = vpop.xlane.xlu0 %437
    %439 = vmatprep.subr.mxu0 0.0
    %440 = vmatpush1.msra.mxu0 0.0
    %441 = vmatprep.subr.mxu0 0.0
    %442 = vmatpush1.msra.mxu0 0.0
    %443 = vmatprep.subr.mxu0 0.0
    %444 = vmatpush1.msra.mxu0 0.0
    %445 = vmatprep.subr.mxu0 0.0
    %446 = vmatpush1.msra.mxu0 0.0
    %447 = vmatprep.subr.mxu0 0.0
    %448 = vmatpush1.msra.mxu0 0.0
    %449 = vmatprep.subr.mxu0 0.0
    %450 = vmatpush1.msra.mxu0 0.0
    %451 = vmatprep.subr.mxu0 0.0
    %452 = vmatpush1.msra.mxu0 0.0
    %453 = vmatprep.subr.mxu0 0.0
    %454 = vmatpush1.msra.mxu0 0.0
    %455 = vmatprep.subr.mxu0 0.0
    %456 = vmatpush1.msra.mxu0 0.0
    %457 = vmatprep.subr.mxu0 0.0
    %458 = vmatpush1.msra.mxu0 0.0
    %459 = vmatprep.subr.mxu0 0.0
    %460 = vmatpush1.msra.mxu0 0.0
    %461 = vmatprep.subr.mxu0 0.0
    %462 = vmatpush1.msra.mxu0 0.0
    %463 = vmatprep.subr.mxu0 0.0
    %464 = vmatpush1.msra.mxu0 0.0
    %465 = vmatprep.subr.mxu0 0.0
    %466 = vmatpush1.msra.mxu0 0.0
    %467 = vmatprep.subr.mxu0 0.0
    %468 = vmatpush1.msra.mxu0 0.0
    %469 = vmatprep.subr.mxu0 0.0
    %470 = vmatpush1.msra.mxu0 %v438
    %471 = vmatprep.subr.mxu0 0.0
    %472 = vmatpush2.msra.mxu0 0.0
    %473 = vmatprep.subr.mxu0 0.0
    %474 = vmatpush2.msra.mxu0 0.0
    %475 = vmatprep.subr.mxu0 0.0
    %476 = vmatpush2.msra.mxu0 0.0
    %477 = vmatprep.subr.mxu0 0.0
    %478 = vmatpush2.msra.mxu0 0.0
    %479 = vmatprep.subr.mxu0 0.0
    %480 = vmatpush2.msra.mxu0 0.0
    %481 = vmatprep.subr.mxu0 0.0
    %482 = vmatpush2.msra.mxu0 0.0
    %483 = vmatprep.subr.mxu0 0.0
    %484 = vmatpush2.msra.mxu0 0.0
    %485 = vmatprep.subr.mxu0 0.0
    %486 = vmatpush2.msra.mxu0 0.0
    %487 = vmatprep.subr.mxu0 0.0
    %488 = vmatpush2.msra.mxu0 0.0
    %489 = vmatprep.subr.mxu0 0.0
    %490 = vmatpush2.msra.mxu0 0.0
    %491 = vmatprep.subr.mxu0 0.0
    %492 = vmatpush2.msra.mxu0 0.0
    %493 = vmatprep.subr.mxu0 0.0
    %494 = vmatpush2.msra.mxu0 0.0
    %495 = vmatprep.subr.mxu0 0.0
    %496 = vmatpush2.msra.mxu0 0.0
    %497 = vmatprep.subr.mxu0 0.0
    %498 = vmatpush2.msra.mxu0 0.0
    %499 = vmatprep.subr.mxu0 0.0
    %500 = vmatpush2.msra.mxu0 0.0
    %501 = vmatprep.subr.mxu0 0.0
    %502 = vmatpush2.msra.mxu0 0.0
    %503 = vmatprep.mubr.f32.mxu0 0.0
    %504 = vmatmul.mubr.f32.gmra.mxu0 %v37
    %v505 = vpop.f32.mrf.mxu0
    %v506 = vadd.f32 0.0, %v505
    %v507 = vpop.f32.mrf.mxu0
    %508 = vmatprep.mubr.f32.mxu0 0.0
    %509 = vmatmul.mubr.f32.gmra.mxu0 %v40
    %v510 = vpop.f32.mrf.mxu0
    %v511 = vadd.f32 0.0, %v510
    %v512 = vpop.f32.mrf.mxu0
    %513 = vdwg.mxu0
    %v514 = vmul.f32 %v426, %v426
    %v515 = vmul.f32 %v428, %v428
    %v516 = vmul.f32 %v432, %v432
    %v517 = vmul.f32 %v434, %v434
    %v518 = vadd.f32 %v514, %v515
    %519 = vadd.xlane.f32.xlu0 %v518
    %v520 = vpop.xlane.xlu0 %519
    %v521 = vadd.f32 %v516, %v517
    %522 = vadd.xlane.f32.xlu0 %v521
    %v523 = vpop.xlane.xlu0 %522
    %v524 = vsel %vm207, %v506, %v520
    %v525 = vsel %vm207, %v511, %v523
    %526 = vmatprep.subr.mxu0 0.0
    %527 = vmatpush1.msra.mxu0 0.0
    %528 = vmatprep.subr.mxu0 0.0
    %529 = vmatpush1.msra.mxu0 0.0
    %530 = vmatprep.subr.mxu0 0.0
    %531 = vmatpush1.msra.mxu0 0.0
    %532 = vmatprep.subr.mxu0 0.0
    %533 = vmatpush1.msra.mxu0 0.0
    %534 = vmatprep.subr.mxu0 0.0
    %535 = vmatpush1.msra.mxu0 0.0
    %536 = vmatprep.subr.mxu0 0.0
    %537 = vmatpush1.msra.mxu0 0.0
    %538 = vmatprep.subr.mxu0 0.0
    %539 = vmatpush1.msra.mxu0 0.0
    %540 = vmatprep.subr.mxu0 0.0
    %541 = vmatpush1.msra.mxu0 0.0
    %542 = vmatprep.subr.mxu0 0.0
    %543 = vmatpush1.msra.mxu0 0.0
    %544 = vmatprep.subr.mxu0 0.0
    %545 = vmatpush1.msra.mxu0 0.0
    %546 = vmatprep.subr.mxu0 0.0
    %547 = vmatpush1.msra.mxu0 0.0
    %548 = vmatprep.subr.mxu0 0.0
    %549 = vmatpush1.msra.mxu0 0.0
    %550 = vmatprep.subr.mxu0 0.0
    %551 = vmatpush1.msra.mxu0 0.0
    %552 = vmatprep.subr.mxu0 0.0
    %553 = vmatpush1.msra.mxu0 0.0
    %554 = vmatprep.subr.mxu0 0.0
    %555 = vmatpush1.msra.mxu0 %v525
    %556 = vmatprep.subr.mxu0 0.0
    %557 = vmatpush1.msra.mxu0 %v524
    %558 = vmatprep.subr.mxu0 0.0
    %559 = vmatpush2.msra.mxu0 0.0
    %560 = vmatprep.subr.mxu0 0.0
    %561 = vmatpush2.msra.mxu0 0.0
    %562 = vmatprep.subr.mxu0 0.0
    %563 = vmatpush2.msra.mxu0 0.0
    %564 = vmatprep.subr.mxu0 0.0
    %565 = vmatpush2.msra.mxu0 0.0
    %566 = vmatprep.subr.mxu0 0.0
    %567 = vmatpush2.msra.mxu0 0.0
    %568 = vmatprep.subr.mxu0 0.0
    %569 = vmatpush2.msra.mxu0 0.0
    %570 = vmatprep.subr.mxu0 0.0
    %571 = vmatpush2.msra.mxu0 0.0
    %572 = vmatprep.subr.mxu0 0.0
    %573 = vmatpush2.msra.mxu0 0.0
    %574 = vmatprep.subr.mxu0 0.0
    %575 = vmatpush2.msra.mxu0 0.0
    %576 = vmatprep.subr.mxu0 0.0
    %577 = vmatpush2.msra.mxu0 0.0
    %578 = vmatprep.subr.mxu0 0.0
    %579 = vmatpush2.msra.mxu0 0.0
    %580 = vmatprep.subr.mxu0 0.0
    %581 = vmatpush2.msra.mxu0 0.0
    %582 = vmatprep.subr.mxu0 0.0
    %583 = vmatpush2.msra.mxu0 0.0
    %584 = vmatprep.subr.mxu0 0.0
    %585 = vmatpush2.msra.mxu0 0.0
    %586 = vmatprep.subr.mxu0 0.0
    %587 = vmatpush2.msra.mxu0 0.0
    %588 = vmatprep.subr.mxu0 0.0
    %589 = vmatpush2.msra.mxu0 0.0
    %590 = vmatprep.mubr.f32.mxu0 0.0
    %591 = vmatmul.mubr.f32.gmra.mxu0 %v212
    %v592 = vpop.f32.mrf.mxu0
    %v593 = vadd.f32 0.0, %v592
    %v594 = vpop.f32.mrf.mxu0
    %595 = vmatprep.mubr.f32.mxu0 0.0
    %596 = vmatmul.mubr.f32.gmra.mxu0 %v215
    %v597 = vpop.f32.mrf.mxu0
    %v598 = vadd.f32 0.0, %v597
    %v599 = vpop.f32.mrf.mxu0
    %600 = vdwg.mxu0
    %v601 = vmul.f32 %v593, 0.0009765625
    %v602 = vmul.f32 %v598, 0.0009765625
    %v603 = vmul.f32 %v601, %v601
    %v604 = vmul.f32 %v602, %v602
    %607 = vrot.lane.b32.xlu0 %v603, 1
    %v608 = vpop.permute.xlu0 %607
    %609 = vrot.lane.b32.xlu0 %v604, 1
    %v610 = vpop.permute.xlu0 %609
    %v613 = vsub.f32 %v601, %v608
    %v614 = vsub.f32 %v602, %v610
    %v615 = vmax.f32 %v613, 0.0
    %v616 = vmax.f32 %v614, 0.0
    %v617 = vadd.f32 %v615, 1e-05
    %v618 = vadd.f32 %v616, 1e-05
    %v619 = vrsqrt.pop %v617
    %v620 = vrsqrt.pop %v618
    %622 = vset.pattern.permute.xlu0 0
    %623 = vperm.xlu0 %622, %v601
    %v624 = vpop.permute.xlu0 %623
    %627 = vset.pattern.permute.xlu0 0
    %628 = vperm.xlu0 %627, %v602
    %v629 = vpop.permute.xlu0 %628
    %v631 = vsub.f32 %v426, %v624
    %v632 = vsub.f32 %v428, %v624
    %v633 = vsub.f32 %v432, %v629
    %v634 = vsub.f32 %v434, %v629
    %636 = vset.pattern.permute.xlu0 1
    %637 = vperm.xlu0 %636, %v619
    %v638 = vpop.permute.xlu0 %637
    %641 = vset.pattern.permute.xlu0 1
    %642 = vperm.xlu0 %641, %v620
    %v643 = vpop.permute.xlu0 %642
    %v645 = vmul.f32 %v631, %v638
    %v646 = vmul.f32 %v632, %v638
    %v647 = vmul.f32 %v633, %v643
    %v648 = vmul.f32 %v634, %v643
    %vm649 = vcmp.ge.f32.partialorder %v645, 0.0
    %vm650 = vcmp.ge.f32.partialorder %v646, 0.0
    %vm651 = vcmp.ge.f32.partialorder %v647, 0.0
    %vm652 = vcmp.ge.f32.partialorder %v648, 0.0
    %v653 = vmul.f32 %v645, 0.2
    %v654 = vmul.f32 %v646, 0.2
    %v655 = vmul.f32 %v647, 0.2
    %v656 = vmul.f32 %v648, 0.2
    %v657 = vsel %vm649, %v645, %v653
    %v658 = vsel %vm650, %v646, %v654
    %v659 = vsel %vm651, %v647, %v655
    %v660 = vsel %vm652, %v648, %v656
    %s661 = scalar_lea.vmem [#allocation5], 32
    %662 = vst [vmem:[%s661] sm:$0xff] %v657
    %663 = vst [vmem:[%s661 + $0x8] sm:$0xff] %v658
    %664 = vst [vmem:[%s661 + $0x10] sm:$0xff] %v659
    %665 = vst [vmem:[%s661 + $0x18] sm:$0xff] %v660
    // Predicated region
    $region18: #{tpu_custom_call.1} parent=1 // pred_check
      _
    $region19: #{tpu_custom_call.1} parent=1 // pred_check_branch
      %667 = sbr.rel (0) target = $region21
    $region20: #{tpu_custom_call.1} parent=1 // pred_region
      %s669 = ssub.s32 1024, 1024
      %670 = vsyncadd [#allocation4], %s669
      %s671 = sshll.u32 [#allocation5], 4
      %s672 = int_to_ptr.vmem [resolvable:$true] %s671
      %677 = dma.vmem_to_hbm [thread:$0]  %s672, 1024, %s3, [#allocation4], 256, 256, 16
    $region21: #{tpu_custom_call.1} parent=1 // pred_fallthru
      _
    // Predicated region
    $region22: #{tpu_custom_call.1} parent=1 // pred_check
      _
    $region23: #{tpu_custom_call.1} parent=1 // pred_check_branch
      %679 = sbr.rel (0) target = $region25
    $region24: #{tpu_custom_call.1} parent=1 // pred_region
      %680 = dma.done [#allocation4], 1024
    $region25: #{tpu_custom_call.1} parent=1 // pred_fallthru
      _
    %681 = vsyncpa [#allocation3], 1
    %682 = vsyncpa [#allocation4], 1

</llo_original>
